<compile_context>
chip_gen: v7x
topology: tpu7x:2x2x1
jax: 0.10.0
libtpu: 0.0.40
codegen_flags: <defaults>
</compile_context>

<pallas_src>
import functools

import jax
import jax.numpy as jnp
from jax.experimental import pallas as pl
from jax.experimental.pallas import tpu as pltpu

_LANE = 128            # weight N padded to this for a clean MXU matmul
_TB_ALIGN = 16         # batch-tile row alignment (sublane packing incl. bf16)
_TB_CAP = 2048         # hard cap on batch-tile rows
_TILE_BYTES = 2 << 20  # ~2 MiB x-tile target (85%+ of HBM roofline, ref data)


def _round_up(x, m):
    return ((x + m - 1) // m) * m


def _linear_kernel(x_ref, wt_ref, b_ref, o_ref, *, out_size):
    # x_ref : (TB, In)       VMEM  batch tile (bf16/f32)
    # wt_ref: (In, OutPad)   VMEM  pre-transposed, lane-padded weight (resident)
    # b_ref : (1, OutPad)    VMEM  lane-padded bias (resident)
    # o_ref : (TB, out_size) VMEM  un-padded output tile (f32)
    acc = jnp.dot(x_ref[...], wt_ref[...], preferred_element_type=jnp.float32)
    acc = acc + b_ref[...].astype(jnp.float32)
    o_ref[...] = acc[:, :out_size].astype(o_ref.dtype)


def prepare_scalar_head_params(weight, bias, param_dtype=jnp.bfloat16):
    """One-time parameter prep (do this at init, NOT per forward).

    weight: [out_size, in_size]  (PyTorch nn.Linear convention)
    bias:   [out_size]
    Returns (wt_pad [in_size, out_pad], b_pad [1, out_pad]) with zero padding
    in the extra lanes.  Default param_dtype=bf16 halves weight HBM traffic;
    MXU accumulation stays f32 in-kernel and the output is stored in f32.
    """
    out_size, in_size = weight.shape
    dt = param_dtype if param_dtype is not None else weight.dtype
    out_pad = _round_up(out_size, _LANE)
    wt_pad = jnp.zeros((in_size, out_pad), dtype=dt)
    wt_pad = wt_pad.at[:, :out_size].set(weight.T.astype(dt))
    b_pad = jnp.zeros((1, out_pad), dtype=dt)
    b_pad = b_pad.at[:, :out_size].set(bias.astype(dt))
    return wt_pad, b_pad


def _choose_tb(batch, in_size, itemsize, tile_bytes):
    """Batch-tile rows from a byte budget; >=2 grid blocks when batch allows."""
    b_pad = _round_up(batch, _TB_ALIGN)
    rows = max(tile_bytes // max(in_size * itemsize, 1), _TB_ALIGN)
    tb = min(_round_up(rows, _TB_ALIGN), _TB_CAP, b_pad)
    if tb >= b_pad and b_pad >= 2 * _TB_ALIGN:
        # Whole batch fit in one tile: split in two so both v7x TCs get work
        # (one extra ~0.35us grid step is noise on v5e/v6e).
        tb = _round_up((b_pad + 1) // 2, _TB_ALIGN)
    return tb


def scalar_head_forward(x, wt_pad, b_pad, out_size, *, tile_bytes=_TILE_BYTES):
    """y = x @ W^T + b  (== torch.nn.Linear forward; ScalarDist's parameter).

    x:      [B, input_size]   (cast to the param dtype upstream for best perf)
    wt_pad: [input_size, out_pad]  (from prepare_scalar_head_params)
    b_pad:  [1, out_pad]
    returns [B, out_size] in float32
    """
    B, in_size = x.shape
    in_w, out_pad = wt_pad.shape
    assert in_size == in_w
    assert out_pad % _LANE == 0 and 0 < out_size <= out_pad

    # Compute in the parameter dtype (bf16 by default); no-op if x already is.
    if x.dtype != wt_pad.dtype:
        x = x.astype(wt_pad.dtype)

    x_item = jnp.dtype(x.dtype).itemsize
    w_item = jnp.dtype(wt_pad.dtype).itemsize
    out_item = jnp.dtype(jnp.float32).itemsize

    tb = _choose_tb(B, in_size, x_item, tile_bytes)
    grid = (pl.cdiv(B, tb),)

    # Per-block VMEM footprint (x/out double-buffered; weight+bias resident
    # but conservatively counted with 2 buffers).  Leave 2x headroom, stay
    # above v5e's 16 MiB default scoped limit, cap at v7x's 64 MiB physical.
    tile_vmem = (2 * tb * in_size * x_item
                 + 2 * in_size * out_pad * w_item
                 + 2 * out_pad * w_item
                 + 2 * tb * out_size * out_item)
    vmem_limit = int(min(max(2 * tile_vmem, 32 << 20), 64 << 20))

    cost = pl.CostEstimate(
        flops=2 * B * in_size * out_pad,
        transcendentals=0,
        bytes_accessed=(B * in_size * x_item
                        + wt_pad.size * w_item
                        + b_pad.size * w_item
                        + B * out_size * out_item),
    )

    return pl.pallas_call(
        functools.partial(_linear_kernel, out_size=out_size),
        out_shape=jax.ShapeDtypeStruct((B, out_size), jnp.float32),
        grid_spec=pltpu.PrefetchScalarGridSpec(
            num_scalar_prefetch=0,
            grid=grid,
            in_specs=[
                pl.BlockSpec((tb, in_size), lambda i: (i, 0)),       # x: batch-tiled
                pl.BlockSpec((in_size, out_pad), lambda i: (0, 0)),  # weight: resident
                pl.BlockSpec((1, out_pad), lambda i: (0, 0)),        # bias: resident
            ],
            out_specs=pl.BlockSpec((tb, out_size), lambda i: (i, 0)),
        ),
        compiler_params=pltpu.CompilerParams(
            dimension_semantics=("parallel",),   # shard batch tiles across TCs (v7x)
            vmem_limit_bytes=vmem_limit,
        ),
        cost_estimate=cost,
    )(x, wt_pad, b_pad)


# TODO(synk): ScalarDist is an external distribution wrapper (not defined in
# the given source); the kernel returns its parameter tensor (linear output).


if __name__ == "__main__":
    key = jax.random.PRNGKey(0)
    k_x, k_w, k_b = jax.random.split(key, 3)

    batch = 48
    input_size = 32
    out_size = 4

    x_f32 = jax.random.normal(k_x, (batch, input_size), dtype=jnp.float32)

    # Deterministic parameter init (nn.Linear shapes: W [out, in], b [out]).
    bound = 1.0 / jnp.sqrt(input_size)
    weight = jax.random.uniform(k_w, (out_size, input_size),
                                minval=-bound, maxval=bound, dtype=jnp.float32)
    bias = jax.random.uniform(k_b, (out_size,),
                              minval=-bound, maxval=bound, dtype=jnp.float32)

    # One-time parameter prep (transpose + lane pad + bf16); not on the fwd path.
    wt_pad, b_pad = prepare_scalar_head_params(weight, bias)  # bf16 default

    # Cast activations once upstream: hot-path HBM bytes halved vs f32.
    x = x_f32.astype(jnp.bfloat16)

    y = scalar_head_forward(x, wt_pad, b_pad, out_size)
    y = jax.block_until_ready(y)

    assert y.shape == (batch, out_size)
    assert y.dtype == jnp.float32

    # Tight check vs a reference using the same bf16-quantized inputs
    # (isolates kernel correctness from the deliberate bf16 cast).
    w_bf = weight.astype(jnp.bfloat16).astype(jnp.float32)
    b_bf = bias.astype(jnp.bfloat16).astype(jnp.float32)
    y_ref_q = x.astype(jnp.float32) @ w_bf.T + b_bf
    assert jnp.allclose(y, y_ref_q, atol=2e-3, rtol=2e-3), "mismatch vs bf16 reference"

    # Loose check vs the full-precision PyTorch-equivalent reference.
    y_ref = x_f32 @ weight.T + bias
    assert jnp.allclose(y, y_ref, atol=5e-2, rtol=5e-2), "mismatch vs f32 reference"

    print("KERNEL_OK")
</pallas_src>

<mosaic_0001>
module attributes {stable_mosaic.version = 11 : i64} {
  func.func @_linear_kernel(%arg0: i32, %arg1: memref<32x32xbf16, #tpu.memory_space<vmem>>, %arg2: memref<32x128xbf16, #tpu.memory_space<vmem>>, %arg3: memref<1x128xbf16, #tpu.memory_space<vmem>>, %arg4: memref<32x4xf32, #tpu.memory_space<vmem>>) attributes {dimension_semantics = [#tpu.dimension_semantics<parallel>], iteration_bounds = array<i64: 2>, scalar_prefetch = 0 : i64, scratch_operands = 0 : i64, tpu.core_type = #tpu.core_type<tc>, window_params = [{transform_indices = @transform_0, window_bounds = array<i64: 32, 32>}, {pipeline_mode = #tpu.pipeline_mode<synchronous>, transform_indices = @transform_1, window_bounds = array<i64: 32, 128>}, {pipeline_mode = #tpu.pipeline_mode<synchronous>, transform_indices = @transform_2, window_bounds = array<i64: 1, 128>}, {transform_indices = @transform_3, window_bounds = array<i64: 32, 4>}]} {
    %c0 = arith.constant 0 : index
    %c0_0 = arith.constant 0 : index
    %0 = vector.load %arg1[%c0, %c0_0] : memref<32x32xbf16, #tpu.memory_space<vmem>>, vector<32x32xbf16>
    %c0_1 = arith.constant 0 : index
    %c0_2 = arith.constant 0 : index
    %1 = vector.load %arg2[%c0_1, %c0_2] : memref<32x128xbf16, #tpu.memory_space<vmem>>, vector<32x128xbf16>
    %cst = arith.constant dense<0.000000e+00> : vector<32x128xf32>
    %2 = tpu.matmul %0, %1, %cst {dimension_numbers = #tpu.dot_dimension_numbers<[1], [0], [0], [1], [0, 0, 1, 1], [], []>} : vector<32x32xbf16>, vector<32x128xbf16>, vector<32x128xf32> -> vector<32x128xf32>
    %c0_3 = arith.constant 0 : index
    %c0_4 = arith.constant 0 : index
    %3 = vector.load %arg3[%c0_3, %c0_4] : memref<1x128xbf16, #tpu.memory_space<vmem>>, vector<1x128xbf16>
    %4 = arith.extf %3 : vector<1x128xbf16> to vector<1x128xf32>
    %5 = vector.broadcast %4 : vector<1x128xf32> to vector<32x128xf32>
    %6 = arith.addf %2, %5 : vector<32x128xf32>
    %7 = vector.extract_strided_slice %6 {offsets = [0, 0], sizes = [32, 4], strides = [1, 1]} : vector<32x128xf32> to vector<32x4xf32>
    %c0_5 = arith.constant 0 : index
    %c0_6 = arith.constant 0 : index
    %8 = vector.load %arg4[%c0_5, %c0_6] : memref<32x4xf32, #tpu.memory_space<vmem>>, vector<32x4xf32>
    tpu.vector_store %arg4[%c0_5, %c0_6], %7 {strides = array<i32>} : memref<32x4xf32, #tpu.memory_space<vmem>>, vector<32x4xf32>,
    return
  }
  func.func @transform_0(%arg0: i32) -> (i32, i32) {
    %c0_i32 = arith.constant 0 : i32
    %c0_i32_0 = arith.constant 0 : i32
    return %arg0, %c0_i32 : i32, i32
  }
  func.func @transform_1(%arg0: i32) -> (i32, i32) {
    %c0_i32 = arith.constant 0 : i32
    %c0_i32_0 = arith.constant 0 : i32
    %c0_i32_1 = arith.constant 0 : i32
    return %c0_i32, %c0_i32_0 : i32, i32
  }
  func.func @transform_2(%arg0: i32) -> (i32, i32) {
    %c0_i32 = arith.constant 0 : i32
    %c0_i32_0 = arith.constant 0 : i32
    %c0_i32_1 = arith.constant 0 : i32
    return %c0_i32, %c0_i32_0 : i32, i32
  }
  func.func @transform_3(%arg0: i32) -> (i32, i32) {
    %c0_i32 = arith.constant 0 : i32
    %c0_i32_0 = arith.constant 0 : i32
    return %arg0, %c0_i32 : i32, i32
  }
}

</mosaic_0001>

<llo_original>
// kernel: tpu_custom_call.1
$region0: #{tpu_custom_call.1}
  #allocation0 [shape = 'u32[]', space=smem, size = 0x4, offset = 0x4, fixed_abs, tag = 'smem constant byte address 0x4 - core index']
  #allocation1 [shape = 'u32[144,128]{1,0:T(1,128)}', space=vmem, size = 0x12000, scoped, tag = 'internal scratch']
  %s0 = inlined_call_operand.vmem [shape: bf16[48,32], index: 0, kind: input, shape index: {}]
  %s1 = inlined_call_operand.vmem [shape: bf16[32,128], index: 1, kind: input, shape index: {}]
  %s2 = inlined_call_operand.vmem [shape: bf16[1,128], index: 2, kind: input, shape index: {}]
  %s3 = inlined_call_operand.vmem [shape: f32[48,4], index: 3, kind: output, shape index: {}]
  %s4 = sld [smem:[#allocation0]]
  $region93: #{tpu_custom_call.1} parent=0
    _
  %s6 = ssub.s32 1, %s4
  %s7 = scalar_select 0, %s6, %s4
  $region1: #{tpu_custom_call.1} parent=0
    #allocation2 [shape = 'u8[32768]{0}', space=vmem, size = 0x8000, scoped, tag = 'output window, operand 0']
    loop: start=0, step=1, limit=4
    $region2: #{tpu_custom_call.1} parent=1 // loop_pre_header
      _
    $region3: #{tpu_custom_call.1} parent=1 // loop_header
      %s9 = sphi 0, %s13
      %p10 = scmp.ge.s32.totalorder %s9, 4
      %s19 = sphi 0, %s21
      %s22 = sphi 0, %s19
      %s23 = sphi 0, %s22
      %s39 = sphi 0, %s23
      %s43 = sphi 0, %s43
      %s45 = sphi 0, %s43
      %s46 = sphi 0, %s45
      %s60 = sphi 0, %s46
      %s64 = sphi 0, %s64
      %s66 = sphi 0, %s64
      %s67 = sphi 0, %s66
      %s81 = sphi 0, %s67
      %s87 = sphi 0, %s89
      %s90 = sphi 0, %s87
      %s91 = sphi 0, %s90
      %s107 = sphi 0, %s91
    $region4: #{tpu_custom_call.1} parent=1 // loop_header_branch
      %12 = sbr.rel (%p10) target = $region8
    $region5: #{tpu_custom_call.1} parent=1 // loop_body
      %s14 = ssub.s32 %s9, 1
      %s15 = ssub.s32 %s9, 2
      %s16 = sadd.s32 %s9, 1
      %s17 = ssub.s32 %s9, %s16
      %p18 = scmp.eq.s32.totalorder %s17, 0
      %s20 = sadd.s32 %s19, 1
      %s21 = scalar_select %p18, %s19, %s20
      %p24 = pneg %p18
      %p25 = scmp.eq.s32.totalorder %s9, 1
      %p26 = por %p24, %p25
      %p27 = scmp.ne.s32.totalorder %s19, %s22
      %p28 = scmp.eq.s32.totalorder %s9, 0
      %p29 = por %p27, %p28
      %p30 = scmp.ne.s32.totalorder %s19, %s22
      %p31 = scmp.eq.s32.totalorder %s14, 1
      %p32 = por %p30, %p31
      %p33 = scmp.ne.s32.totalorder %s22, %s23
      %p34 = scmp.eq.s32.totalorder %s14, 0
      %p35 = por %p33, %p34
      %p36 = scmp.ne.s32.totalorder %s22, %s23
      %p37 = scmp.eq.s32.totalorder %s15, 1
      %p38 = por %p36, %p37
      %p40 = scmp.ne.s32.totalorder %s23, %s39
      %p41 = scmp.eq.s32.totalorder %s15, 0
      %p42 = por %p40, %p41
      %s44 = sadd.s32 %s43, 1
      %p47 = scmp.eq.s32.totalorder %s9, 1
      %p48 = scmp.ne.s32.totalorder %s43, %s45
      %p49 = scmp.eq.s32.totalorder %s9, 0
      %p50 = por %p48, %p49
      %p51 = scmp.ne.s32.totalorder %s43, %s45
      %p52 = scmp.eq.s32.totalorder %s14, 1
      %p53 = por %p51, %p52
      %p54 = scmp.ne.s32.totalorder %s45, %s46
      %p55 = scmp.eq.s32.totalorder %s14, 0
      %p56 = por %p54, %p55
      %p57 = scmp.ne.s32.totalorder %s45, %s46
      %p58 = scmp.eq.s32.totalorder %s15, 1
      %p59 = por %p57, %p58
      %p61 = scmp.ne.s32.totalorder %s46, %s60
      %p62 = scmp.eq.s32.totalorder %s15, 0
      %p63 = por %p61, %p62
      %s65 = sadd.s32 %s64, 1
      %p68 = scmp.eq.s32.totalorder %s9, 1
      %p69 = scmp.ne.s32.totalorder %s64, %s66
      %p70 = scmp.eq.s32.totalorder %s9, 0
      %p71 = por %p69, %p70
      %p72 = scmp.ne.s32.totalorder %s64, %s66
      %p73 = scmp.eq.s32.totalorder %s14, 1
      %p74 = por %p72, %p73
      %p75 = scmp.ne.s32.totalorder %s66, %s67
      %p76 = scmp.eq.s32.totalorder %s14, 0
      %p77 = por %p75, %p76
      %p78 = scmp.ne.s32.totalorder %s66, %s67
      %p79 = scmp.eq.s32.totalorder %s15, 1
      %p80 = por %p78, %p79
      %p82 = scmp.ne.s32.totalorder %s67, %s81
      %p83 = scmp.eq.s32.totalorder %s15, 0
      %p84 = por %p82, %p83
      %s85 = ssub.s32 %s9, %s16
      %p86 = scmp.eq.s32.totalorder %s85, 0
      %s88 = sadd.s32 %s87, 1
      %s89 = scalar_select %p86, %s87, %s88
      %p92 = pneg %p86
      %p93 = scmp.eq.s32.totalorder %s9, 1
      %p94 = por %p92, %p93
      %p95 = scmp.ne.s32.totalorder %s87, %s90
      %p96 = scmp.eq.s32.totalorder %s9, 0
      %p97 = por %p95, %p96
      %p98 = scmp.ne.s32.totalorder %s87, %s90
      %p99 = scmp.eq.s32.totalorder %s14, 1
      %p100 = por %p98, %p99
      %p101 = scmp.ne.s32.totalorder %s90, %s91
      %p102 = scmp.eq.s32.totalorder %s14, 0
      %p103 = por %p101, %p102
      %p104 = scmp.ne.s32.totalorder %s90, %s91
      %p105 = scmp.eq.s32.totalorder %s15, 1
      %p106 = por %p104, %p105
      %p108 = scmp.ne.s32.totalorder %s91, %s107
      %p109 = scmp.eq.s32.totalorder %s15, 0
      %p110 = por %p108, %p109
      %p111 = scmp.le.s32.totalorder 1, %s9
      %p112 = scmp.lt.s32.totalorder %s9, 3
      %p113 = pnand %p111, %p112
      %p114 = pneg %p113
      // Predicated region
      $region9: #{tpu_custom_call.1} parent=5 // pred_check
        _
      $region10: #{tpu_custom_call.1} parent=5 // pred_check_branch
        %116 = sbr.rel (%p113) target = $region12
      $region11: #{tpu_custom_call.1} parent=5 // pred_region
        %s117 = ssub.s32 %s9, 1
        // Predicated region
        $region13: #{tpu_custom_call.1} parent=11 // pred_check
          %p118 = pneg %p56
        $region14: #{tpu_custom_call.1} parent=11 // pred_check_branch
          %120 = sbr.rel (%p118) target = $region16
        $region15: #{tpu_custom_call.1} parent=11 // pred_region
          _
        $region16: #{tpu_custom_call.1} parent=11 // pred_fallthru
          _
        // Predicated region
        $region17: #{tpu_custom_call.1} parent=11 // pred_check
          %p121 = pneg %p77
        $region18: #{tpu_custom_call.1} parent=11 // pred_check_branch
          %123 = sbr.rel (%p121) target = $region20
        $region19: #{tpu_custom_call.1} parent=11 // pred_region
          _
        $region20: #{tpu_custom_call.1} parent=11 // pred_fallthru
          _
      $region12: #{tpu_custom_call.1} parent=5 // pred_fallthru
        _
      %p124 = scmp.lt.s32.totalorder %s9, 2
      // Predicated region
      $region21: #{tpu_custom_call.1} parent=5 // pred_check
        %p125 = pneg %p124
      $region22: #{tpu_custom_call.1} parent=5 // pred_check_branch
        %127 = sbr.rel (%p125) target = $region24
      $region23: #{tpu_custom_call.1} parent=5 // pred_region
        // Predicated region
        $region25: #{tpu_custom_call.1} parent=23 // pred_check
          %p128 = pneg %p29
        $region26: #{tpu_custom_call.1} parent=23 // pred_check_branch
          %130 = sbr.rel (%p128) target = $region28
        $region27: #{tpu_custom_call.1} parent=23 // pred_region
          %s131 = smul.u32 4, %s9
          %s132 = ssub.s32 6, %s131
          %p133 = scmp.lt.s32.totalorder %s132, 4
          %s134 = scalar_select %p133, %s132, 4
          %s135 = smul.u32 64, %s134
          %p136 = scmp.lt.s32.totalorder %s131, 5
          %s137 = scalar_select %p136, %s131, 5
          %s138 = smul.addr %s137, 4
          %s139 = scalar_lea.vmem %s0, %s138
          %s140 = smul.u32 4, %s9
          %s141 = ssub.s32 6, %s140
          %p142 = scmp.lt.s32.totalorder %s141, 4
          %s143 = scalar_select %p142, %s141, 4
          %s144 = smul.u32 64, %s143
        $region28: #{tpu_custom_call.1} parent=23 // pred_fallthru
          _
      $region24: #{tpu_custom_call.1} parent=5 // pred_fallthru
        _
      %p145 = scmp.le.s32.totalorder 1, %s9
      %p146 = scmp.lt.s32.totalorder %s9, 3
      %p147 = pnand %p145, %p146
      %p148 = pneg %p147
      // Predicated region
      $region29: #{tpu_custom_call.1} parent=5 // pred_check
        _
      $region30: #{tpu_custom_call.1} parent=5 // pred_check_branch
        %150 = sbr.rel (%p147) target = $region32
      $region31: #{tpu_custom_call.1} parent=5 // pred_region
        %s151 = ssub.s32 %s9, 1
        %s152 = smul.u32 4, %s14
        %s153 = ssub.s32 6, %s152
        %p154 = scmp.lt.s32.totalorder %s153, 4
        %s155 = scalar_select %p154, %s153, 4
        %s156 = smul.u32 64, %s155
        %p157 = scmp.lt.s32.totalorder %s152, 5
        %s158 = scalar_select %p157, %s152, 5
        %s159 = smul.addr %s158, 4
        %s160 = scalar_lea.vmem %s0, %s159
        %p161 = pneg %p35
        %p162 = pneg %p32
        %p163 = pneg %p56
        %p164 = pneg %p53
        %p165 = pneg %p77
        %p166 = pneg %p74
        %p167 = pneg %p103
        %p168 = pneg %p100
        %s169 = sand.u32 %s90, 1
        %s170 = sand.u32 %s90, 1
        %s171 = smul.addr %s170, 32
        %s172 = scalar_lea.vmem [#allocation2], %s171
        %s173 = smul.u32 4, %s14
        %s174 = ssub.s32 6, %s173
        %p175 = scmp.lt.s32.totalorder %s174, 4
        %s176 = scalar_select %p175, %s174, 4
        %s177 = smul.u32 64, %s176
        %p178 = scmp.lt.s32.totalorder %s173, 5
        %s179 = scalar_select %p178, %s173, 5
        %s180 = smul.addr %s179, 4
        %s181 = scalar_lea.vmem %s0, %s180
        %s182 = smul.u32 4, %s14
        %s183 = ssub.s32 6, %s182
        %p184 = scmp.lt.s32.totalorder %s183, 4
        %s185 = scalar_select %p184, %s183, 4
        %s186 = smul.u32 64, %s185
        %s187 = smul.u32 4, %s14
        %s188 = ssub.s32 6, %s187
        %p189 = scmp.lt.s32.totalorder %s188, 4
        %s190 = scalar_select %p189, %s188, 4
        %s191 = smul.u32 128, %s190
        %v193 = vld [vmem:[%s181] sm:$0xf]
        %v194 = vld [vmem:[%s181 + $0x4] sm:$0xf]
        %v195 = vld [vmem:[%s181 + $0x8] sm:$0xf]
        %v196 = vld [vmem:[%s181 + $0xc] sm:$0xf]
        %v197 = vld [vmem:[%s1] sm:$0xf]
        %v198 = vld [vmem:[%s1 + $0x4] sm:$0xf]
        %v199 = vld [vmem:[%s1 + $0x8] sm:$0xf]
        %v200 = vld [vmem:[%s1 + $0xc] sm:$0xf]
        %v201 = vld [vmem:[%s2] sm:$0x1]
        %v202 = vunpack.c.l.bf16 %v201
        %v203 = vlaneseq
        %v204 = vshrl.u32 %v203, 7
        %v205 = vsub.s32 0, %v204
        %v206 = vrot.slane %v202, %v205
        %v211 = vunpack.c.l.b16 %v193
        %v212 = vunpack.c.l.b16 %v194
        %v213 = vunpack.c.l.b16 %v195
        %v214 = vunpack.c.l.b16 %v196
        %v215 = vpack.c.b16 %v212, %v211
        %v216 = vpack.c.b16 %v214, %v213
        %v221 = vunpack.c.l.b16 %v197
        %v222 = vunpack.c.l.b16 %v198
        %v223 = vunpack.c.l.b16 %v199
        %v224 = vunpack.c.l.b16 %v200
        %v225 = vpack.c.b16 %v222, %v221
        %v226 = vpack.c.b16 %v224, %v223
        %vm229 = vcmask 261120
        %v231 = vsel %vm229, %v215, 0
        %v234 = vsel %vm229, %v216, 0
        %236 = vmatprep.subr.bf16.mxu0 0
        %237 = vmatpush1.bf16.msra.mxu0 %v225
        %238 = vmatprep.subr.bf16.mxu0 0
        %239 = vmatpush1.bf16.msra.mxu0 %v226
        %240 = vmatprep.subr.bf16.mxu0 0
        %241 = vmatpush1.bf16.msra.mxu0 0
        %242 = vmatprep.subr.bf16.mxu0 0
        %243 = vmatpush1.bf16.msra.mxu0 0
        %244 = vmatprep.subr.bf16.mxu0 0
        %245 = vmatpush1.bf16.msra.mxu0 0
        %246 = vmatprep.subr.bf16.mxu0 0
        %247 = vmatpush1.bf16.msra.mxu0 0
        %248 = vmatprep.subr.bf16.mxu0 0
        %249 = vmatpush1.bf16.msra.mxu0 0
        %250 = vmatprep.subr.bf16.mxu0 0
        %251 = vmatpush1.bf16.msra.mxu0 0
        %252 = vmatprep.subr.bf16.mxu0 0
        %253 = vmatpush1.bf16.msra.mxu0 0
        %254 = vmatprep.subr.bf16.mxu0 0
        %255 = vmatpush1.bf16.msra.mxu0 0
        %256 = vmatprep.subr.bf16.mxu0 0
        %257 = vmatpush1.bf16.msra.mxu0 0
        %258 = vmatprep.subr.bf16.mxu0 0
        %259 = vmatpush1.bf16.msra.mxu0 0
        %260 = vmatprep.subr.bf16.mxu0 0
        %261 = vmatpush1.bf16.msra.mxu0 0
        %262 = vmatprep.subr.bf16.mxu0 0
        %263 = vmatpush1.bf16.msra.mxu0 0
        %264 = vmatprep.subr.bf16.mxu0 0
        %265 = vmatpush1.bf16.msra.mxu0 0
        %266 = vmatprep.subr.bf16.mxu0 0
        %267 = vmatpush1.bf16.msra.mxu0 0
        %268 = vmatprep.mubr.bf16.mxu0 0
        %269 = vmatmul.mubr.bf16.gmra.mrb[0].mxu0 %v231
        %v270 = vpop.f32.mrb[0].mxu0
        %v271 = vadd.f32 %v206, %v270
        %v272 = vpop.f32.mrb[0].mxu0
        %v273 = vpop.f32.mrb[0].mxu0
        %v274 = vadd.f32 %v206, %v273
        %v275 = vpop.f32.mrb[0].mxu0
        %276 = vmatprep.mubr.bf16.mxu0 0
        %277 = vmatmul.mubr.bf16.gmra.mrb[0].mxu0 %v234
        %v278 = vpop.f32.mrb[0].mxu0
        %v279 = vadd.f32 %v206, %v278
        %v280 = vpop.f32.mrb[0].mxu0
        %v281 = vpop.f32.mrb[0].mxu0
        %v282 = vadd.f32 %v206, %v281
        %v283 = vpop.f32.mrb[0].mxu0
        %284 = vdwg.mxu0
        %vm285 = vcmask 31744
        %286 = vst.msk [vmem:[%s172] sm:$0xff] %vm285, %v271
        %287 = vst.msk [vmem:[%s172 + $0x8] sm:$0xff] %vm285, %v274
        %288 = vst.msk [vmem:[%s172 + $0x10] sm:$0xff] %vm285, %v279
        %289 = vst.msk [vmem:[%s172 + $0x18] sm:$0xff] %vm285, %v282
        %s290 = sand.u32 %s90, 1
        %s291 = sand.u32 %s90, 1
        %s292 = smul.addr %s291, 32
        %s293 = scalar_lea.vmem [#allocation2], %s292
        // Predicated region
        $region33: #{tpu_custom_call.1} parent=31 // pred_check
          %p294 = pneg %p100
        $region34: #{tpu_custom_call.1} parent=31 // pred_check_branch
          %296 = sbr.rel (%p294) target = $region36
        $region35: #{tpu_custom_call.1} parent=31 // pred_region
          %s297 = smul.u32 4, %s14
          %s298 = ssub.s32 6, %s297
          %p299 = scmp.lt.s32.totalorder %s298, 4
          %s300 = scalar_select %p299, %s298, 4
          %s301 = smul.u32 128, %s300
          %p302 = scmp.ne.s32.totalorder 0, %s301
          %s303 = smul.addr %s297, 8
          %s304 = scalar_lea.vmem %s3, %s303
          // Predicated region
          $region37: #{tpu_custom_call.1} parent=35 // pred_check
            %p305 = pneg %p302
          $region38: #{tpu_custom_call.1} parent=35 // pred_check_branch
            %307 = sbr.rel (%p305) target = $region40
          $region39: #{tpu_custom_call.1} parent=35 // pred_region
            // Predicated region
            $region41: #{tpu_custom_call.1} parent=39 // pred_check
              _
            $region42: #{tpu_custom_call.1} parent=39 // pred_check_branch
              %309 = sbr.rel (0) target = $region44
            $region43: #{tpu_custom_call.1} parent=39 // pred_region
              // Predicated region
              $region63: #{tpu_custom_call.1} parent=43 // pred_check
                _
              $region64: #{tpu_custom_call.1} parent=43 // pred_check_branch
                %364 = sbr.rel (0) target = $region66
              $region65: #{tpu_custom_call.1} parent=43 // pred_region
                %s365 = sshrl.u32 %s300, 2
                // While loop
                $region67: #{tpu_custom_call.1} parent=65 // loop_pre_header
                  _
                $region68: #{tpu_custom_call.1} parent=65 // loop_header
                  %s367 = sphi 0, %s369
                  %p368 = scmp.ge.s32.totalorder %s367, %s365
                  %s372 = sphi 0, %s385
                  %s373 = sphi %s293, %s388
                  %s374 = sphi %s304, %s389
                $region69: #{tpu_custom_call.1} parent=65 // loop_header_branch
                  %371 = sbr.rel (%p368) target = $region73
                $region70: #{tpu_custom_call.1} parent=65 // loop_body
                  %v375 = vld [vmem:[%s373] sm:$0xff]
                  %376 = vst [vmem:[%s374] sm:$0xff] %v375
                  %v377 = vld [vmem:[%s373 + $0x8] sm:$0xff]
                  %378 = vst [vmem:[%s374 + $0x8] sm:$0xff] %v377
                  %v379 = vld [vmem:[%s373 + $0x10] sm:$0xff]
                  %380 = vst [vmem:[%s374 + $0x10] sm:$0xff] %v379
                  %v381 = vld [vmem:[%s373 + $0x18] sm:$0xff]
                  %382 = vst [vmem:[%s374 + $0x18] sm:$0xff] %v381
                  %s383 = sadd.s32 1, %s372
                  %p384 = scmp.ge.s32.totalorder %s383, %s365
                  %s385 = scalar_select %p384, 0, %s383
                  %s386 = smul.u32 %s385, 32
                  %s387 = smul.u32 %s385, 32
                  %s388 = scalar_lea.vmem %s293, %s386 [#allocation2]
                  %s389 = scalar_lea.vmem %s304, %s387
                $region71: #{tpu_custom_call.1} parent=65 // loop_footer
                  %s369 = sadd.s32 %s367, 1
                $region72: #{tpu_custom_call.1} parent=65 // loop_footer_branch
                  %366 = sbr.rel target = $region68
                $region73: #{tpu_custom_call.1} parent=65 // loop_exit
                  _
                %s390 = sshrl.u32 %s300, 2
                %s391 = sand.u32 %s300, 3
                %s392 = smul.u32 %s390, 4
                %s393 = smul.u32 8, %s392
                %s394 = scalar_lea.vmem %s293, %s393 [#allocation2]
                %s395 = smul.u32 8, %s392
                %s396 = scalar_lea.vmem %s304, %s395
                // While loop
                $region74: #{tpu_custom_call.1} parent=65 // loop_pre_header
                  _
                $region75: #{tpu_custom_call.1} parent=65 // loop_header
                  %s398 = sphi 0, %s400
                  %p399 = scmp.ge.s32.totalorder %s398, %s391
                  %s403 = sphi 0, %s410
                  %s404 = sphi %s394, %s413
                  %s405 = sphi %s396, %s414
                $region76: #{tpu_custom_call.1} parent=65 // loop_header_branch
                  %402 = sbr.rel (%p399) target = $region80
                $region77: #{tpu_custom_call.1} parent=65 // loop_body
                  %v406 = vld [vmem:[%s404] sm:$0xff]
                  %407 = vst [vmem:[%s405] sm:$0xff] %v406
                  %s408 = sadd.s32 1, %s403
                  %p409 = scmp.ge.s32.totalorder %s408, %s391
                  %s410 = scalar_select %p409, 0, %s408
                  %s411 = smul.u32 %s410, 8
                  %s412 = smul.u32 %s410, 8
                  %s413 = scalar_lea.vmem %s394, %s411 [#allocation2]
                  %s414 = scalar_lea.vmem %s396, %s412
                $region78: #{tpu_custom_call.1} parent=65 // loop_footer
                  %s400 = sadd.s32 %s398, 1
                $region79: #{tpu_custom_call.1} parent=65 // loop_footer_branch
                  %397 = sbr.rel target = $region75
                $region80: #{tpu_custom_call.1} parent=65 // loop_exit
                  _
              $region66: #{tpu_custom_call.1} parent=43 // pred_fallthru
                _
              // Predicated region
              $region81: #{tpu_custom_call.1} parent=43 // pred_check
                _
              $region82: #{tpu_custom_call.1} parent=43 // pred_check_branch
                %416 = sbr.rel target = $region84
              $region83: #{tpu_custom_call.1} parent=43 // pred_region
                _
              $region84: #{tpu_custom_call.1} parent=43 // pred_fallthru
                _
            $region44: #{tpu_custom_call.1} parent=39 // pred_fallthru
              _
            // Predicated region
            $region45: #{tpu_custom_call.1} parent=39 // pred_check
              _
            $region46: #{tpu_custom_call.1} parent=39 // pred_check_branch
              %311 = sbr.rel target = $region48
            $region47: #{tpu_custom_call.1} parent=39 // pred_region
              %s313 = sshrl.u32 %s300, 2
              // While loop
              $region49: #{tpu_custom_call.1} parent=47 // loop_pre_header
                _
              $region50: #{tpu_custom_call.1} parent=47 // loop_header
                %s315 = sphi 0, %s317
                %p316 = scmp.ge.s32.totalorder %s315, %s313
                %s320 = sphi 0, %s333
                %s321 = sphi %s293, %s336
                %s322 = sphi %s304, %s337
              $region51: #{tpu_custom_call.1} parent=47 // loop_header_branch
                %319 = sbr.rel (%p316) target = $region55
              $region52: #{tpu_custom_call.1} parent=47 // loop_body
                %v323 = vld [vmem:[%s321] sm:$0xff]
                %324 = vst [vmem:[%s322] sm:$0xff] %v323
                %v325 = vld [vmem:[%s321 + $0x8] sm:$0xff]
                %326 = vst [vmem:[%s322 + $0x8] sm:$0xff] %v325
                %v327 = vld [vmem:[%s321 + $0x10] sm:$0xff]
                %328 = vst [vmem:[%s322 + $0x10] sm:$0xff] %v327
                %v329 = vld [vmem:[%s321 + $0x18] sm:$0xff]
                %330 = vst [vmem:[%s322 + $0x18] sm:$0xff] %v329
                %s331 = sadd.s32 1, %s320
                %p332 = scmp.ge.s32.totalorder %s331, %s313
                %s333 = scalar_select %p332, 0, %s331
                %s334 = smul.u32 %s333, 32
                %s335 = smul.u32 %s333, 32
                %s336 = scalar_lea.vmem %s293, %s334 [#allocation2]
                %s337 = scalar_lea.vmem %s304, %s335
              $region53: #{tpu_custom_call.1} parent=47 // loop_footer
                %s317 = sadd.s32 %s315, 1
              $region54: #{tpu_custom_call.1} parent=47 // loop_footer_branch
                %314 = sbr.rel target = $region50
              $region55: #{tpu_custom_call.1} parent=47 // loop_exit
                _
              %s338 = sshrl.u32 %s300, 2
              %s339 = sand.u32 %s300, 3
              %s340 = smul.u32 %s338, 4
              %s341 = smul.u32 8, %s340
              %s342 = scalar_lea.vmem %s293, %s341 [#allocation2]
              %s343 = smul.u32 8, %s340
              %s344 = scalar_lea.vmem %s304, %s343
              // While loop
              $region56: #{tpu_custom_call.1} parent=47 // loop_pre_header
                _
              $region57: #{tpu_custom_call.1} parent=47 // loop_header
                %s346 = sphi 0, %s348
                %p347 = scmp.ge.s32.totalorder %s346, %s339
                %s351 = sphi 0, %s358
                %s352 = sphi %s342, %s361
                %s353 = sphi %s344, %s362
              $region58: #{tpu_custom_call.1} parent=47 // loop_header_branch
                %350 = sbr.rel (%p347) target = $region62
              $region59: #{tpu_custom_call.1} parent=47 // loop_body
                %v354 = vld [vmem:[%s352] sm:$0xff]
                %355 = vst [vmem:[%s353] sm:$0xff] %v354
                %s356 = sadd.s32 1, %s351
                %p357 = scmp.ge.s32.totalorder %s356, %s339
                %s358 = scalar_select %p357, 0, %s356
                %s359 = smul.u32 %s358, 8
                %s360 = smul.u32 %s358, 8
                %s361 = scalar_lea.vmem %s342, %s359 [#allocation2]
                %s362 = scalar_lea.vmem %s344, %s360
              $region60: #{tpu_custom_call.1} parent=47 // loop_footer
                %s348 = sadd.s32 %s346, 1
              $region61: #{tpu_custom_call.1} parent=47 // loop_footer_branch
                %345 = sbr.rel target = $region57
              $region62: #{tpu_custom_call.1} parent=47 // loop_exit
                _
            $region48: #{tpu_custom_call.1} parent=39 // pred_fallthru
              _
          $region40: #{tpu_custom_call.1} parent=35 // pred_fallthru
            _
          %417 = vnop
        $region36: #{tpu_custom_call.1} parent=31 // pred_fallthru
          _
      $region32: #{tpu_custom_call.1} parent=5 // pred_fallthru
        _
      %p418 = scmp.le.s32.totalorder 2, %s9
      // Predicated region
      $region85: #{tpu_custom_call.1} parent=5 // pred_check
        %p419 = pneg %p418
      $region86: #{tpu_custom_call.1} parent=5 // pred_check_branch
        %421 = sbr.rel (%p419) target = $region88
      $region87: #{tpu_custom_call.1} parent=5 // pred_region
        %s422 = ssub.s32 %s9, 2
        // Predicated region
        $region89: #{tpu_custom_call.1} parent=87 // pred_check
          %p423 = pneg %p106
        $region90: #{tpu_custom_call.1} parent=87 // pred_check_branch
          %425 = sbr.rel (%p423) target = $region92
        $region91: #{tpu_custom_call.1} parent=87 // pred_region
          %s426 = sand.u32 %s91, 1
          %s427 = sand.u32 %s91, 1
          %s428 = smul.addr %s427, 32
          %s429 = scalar_lea.vmem [#allocation2], %s428
        $region92: #{tpu_custom_call.1} parent=87 // pred_fallthru
          _
      $region88: #{tpu_custom_call.1} parent=5 // pred_fallthru
        _
    $region6: #{tpu_custom_call.1} parent=1 // loop_footer
      %s13 = sadd.s32 1, %s9
    $region7: #{tpu_custom_call.1} parent=1 // loop_footer_branch
      %8 = sbr.rel target = $region3
    $region8: #{tpu_custom_call.1} parent=1 // loop_exit
      _

</llo_original>
